<compile_context>
chip_gen: v5e
topology: v5e:2x2
jax: 0.10.0
libtpu: 0.0.40
codegen_flags: <defaults>
</compile_context>

<pallas_src>
import math

import jax
import jax.numpy as jnp
from jax import lax
from jax.experimental import pallas as pl
from jax.experimental.pallas import tpu as pltpu


def _cossim_kernel(x_ref, cnt_ref, o_ref, inv_ref):
    """One (tm, tn) tile of the cosine-similarity logits.

    x_ref   : (tm, nfeat)  raw activations (native dtype, un-normalized)
    cnt_ref : (nfeat, tn)  pre-normalized, pre-transposed centroids
    o_ref   : (tm, tn)     logits tile
    inv_ref : (tm, 1) f32  scratch: 1/||x_row||_2 cached across class tiles
    """
    # The x block index depends only on the batch-grid axis, so the tile is
    # DMA'd once per batch tile; compute its inverse row norm only on the
    # first class tile and reuse the scratch for all remaining class tiles.
    @pl.when(pl.program_id(1) == 0)
    def _():
        x32 = x_ref[...].astype(jnp.float32)
        inv_ref[...] = lax.rsqrt(jnp.sum(x32 * x32, axis=-1, keepdims=True))

    # Raw-operand MXU matmul (native dtype in, f32 accumulation). Scaling the
    # small (tm, tn) result replaces dividing the whole (tm, nfeat) tile.
    s = jnp.dot(x_ref[...], cnt_ref[...], preferred_element_type=jnp.float32)
    o_ref[...] = (s * inv_ref[...]).astype(o_ref.dtype)


def _cdiv(a, b):
    return -(-a // b)


def _round_up(x, m):
    return ((x + m - 1) // m) * m


def _vmem_limit_bytes():
    """Scoped-VMEM limit to request: ~3/4 of physical, capped at 96 MiB.
    (v5e/v6e: 128 MiB physical -> 96 MiB; v7x: 64 MiB per TC -> 48 MiB.)"""
    try:
        cap = int(pltpu.get_tpu_info().vmem_capacity_bytes)
    except Exception:
        cap = 64 << 20  # conservative fallback (v7x per-core size)
    return min((cap * 3) // 4, 96 << 20)


def _pick_tiles(batch, nclass, nfeat, x_bytes, c_bytes, o_bytes, budget):
    """Choose (tm, tn, batch_pad, nclass_pad).

    tm is maximized first: centroid HBM traffic is ceil(batch/tm)*nclass*nfeat
    bytes, so arithmetic intensity ~ tm FLOPs/byte.  tn (lane-dense, multiple
    of 128) is then grown to amortize per-step overhead.  Footprint model
    (double-buffered inputs/output + inv scratch):
        2*tm*nfeat*xb + 2*nfeat*tn*cb + 2*tm*tn*ob + 4*tm  <=  budget
    """
    # Sub-32-bit dtypes pack rows along sublanes -> 16/32-row granularity.
    gm = 8 * max(1, 4 // max(1, x_bytes))
    tm_target, tn_target = 1024, 512

    tm_cap = min(tm_target, _round_up(batch, gm))
    tn_cap = min(tn_target, _round_up(nclass, 128))

    # Largest tm (multiple of gm) that fits next to a minimal 128-wide tn.
    tn0 = 128
    denom = 2 * nfeat * x_bytes + 2 * tn0 * o_bytes + 4
    tm = (budget - 2 * nfeat * tn0 * c_bytes) // denom
    tm = max(gm, min(tm_cap, (tm // gm) * gm))

    # Largest lane-dense tn that still fits alongside that tm.
    denom = 2 * nfeat * c_bytes + 2 * tm * o_bytes
    tn = (budget - 2 * tm * nfeat * x_bytes - 4 * tm) // denom
    tn = max(128, min(tn_cap, (tn // 128) * 128))
    # NOTE: if even a (gm, 128) tile exceeds the budget (enormous nfeat), the
    # next step would be K (nfeat) tiling with an f32 accumulator; not needed
    # for realistic classifier-head sizes.

    # Balance the tiles over the true extents to minimize padding waste.
    n_i = _cdiv(batch, tm)
    tm = max(gm, _round_up(_cdiv(batch, n_i), gm))
    n_j = _cdiv(nclass, tn)
    tn = max(128, _round_up(_cdiv(nclass, n_j), 128))

    return tm, tn, n_i * tm, n_j * tn


def cossim(x, centroids):
    """x: (..., nfeat), centroids: (nclass, nfeat) -> logits (..., nclass)."""
    *lead, nfeat = x.shape
    nclass, nfeat_c = centroids.shape
    assert nfeat == nfeat_c
    batch = int(math.prod(lead)) if lead else 1
    x2d = x.reshape(batch, nfeat)

    # Normalize the centroid table once (module weights) and pre-transpose to
    # (nfeat, nclass): hoists the per-grid-step reduce/rsqrt/divide out of the
    # kernel loop and hands the MXU a plain (M,K)x(K,N) matmul with a
    # lane-dense class dimension.  No epsilon -> matches torch.div exactly.
    c32 = centroids.astype(jnp.float32)
    cn = c32 * lax.rsqrt(jnp.sum(c32 * c32, axis=-1, keepdims=True))
    cnt = cn.T.astype(centroids.dtype)  # (nfeat, nclass)

    xb = jnp.dtype(x.dtype).itemsize
    cb = jnp.dtype(centroids.dtype).itemsize
    ob = xb
    vmem_limit = _vmem_limit_bytes()
    budget = int(vmem_limit * 0.85)  # headroom for Mosaic-internal scratch
    tm, tn, batch_pad, nclass_pad = _pick_tiles(
        batch, nclass, nfeat, xb, cb, ob, budget)

    # Pad to tile multiples (padded rows/cols are sliced off the output; any
    # NaN/garbage produced in the padded region is discarded).
    if batch_pad != batch:
        x2d = jnp.pad(x2d, ((0, batch_pad - batch), (0, 0)))
    if nclass_pad != nclass:
        cnt = jnp.pad(cnt, ((0, 0), (0, nclass_pad - nclass)))

    grid = (batch_pad // tm, nclass_pad // tn)

    out = pl.pallas_call(
        _cossim_kernel,
        out_shape=jax.ShapeDtypeStruct((batch_pad, nclass_pad), x.dtype),
        grid_spec=pltpu.PrefetchScalarGridSpec(
            num_scalar_prefetch=0,
            grid=grid,
            in_specs=[
                # x row tile; feature dim kept whole so the row-norm reduction
                # stays inside one block.  Block index depends only on i, so
                # the tile is fetched once per batch tile (resident across j).
                pl.BlockSpec((tm, nfeat), lambda i, j: (i, 0)),
                # pre-normalized, pre-transposed centroid tile (lane-dense N).
                pl.BlockSpec((nfeat, tn), lambda i, j: (0, j)),
            ],
            out_specs=pl.BlockSpec((tm, tn), lambda i, j: (i, j)),
            scratch_shapes=[pltpu.VMEM((tm, 1), jnp.float32)],
        ),
        compiler_params=pltpu.CompilerParams(
            # batch axis: megacore-parallel; class axis must stay sequential
            # ("arbitrary") so the cached inv_x scratch is valid per core.
            dimension_semantics=("parallel", "arbitrary"),
            vmem_limit_bytes=vmem_limit,
        ),
        cost_estimate=pl.CostEstimate(
            flops=2 * batch * nclass * nfeat + 3 * batch * nfeat,
            transcendentals=batch,
            bytes_accessed=(batch * nfeat * xb + nclass * nfeat * cb
                            + batch * nclass * ob),
        ),
    )(x2d, cnt)

    out = out[:batch, :nclass]
    return out.reshape(*lead, nclass) if lead else out.reshape(nclass)


def cossim_reference(x, centroids):
    xn = x / jnp.linalg.norm(x, axis=-1, keepdims=True)
    cn = centroids / jnp.linalg.norm(centroids, axis=-1, keepdims=True)
    return xn @ cn.T


if __name__ == "__main__":
    # Module __init__: CosSim(nfeat, nclass), centroids ~ randn(nclass, nfeat)
    batch, nfeat, nclass = 8, 32, 16

    key = jax.random.PRNGKey(0)
    kx, kc = jax.random.split(key)
    x = jax.random.normal(kx, (batch, nfeat), dtype=jnp.float32)
    centroids = jax.random.normal(kc, (nclass, nfeat), dtype=jnp.float32)

    logits = cossim(x, centroids)
    jax.block_until_ready(logits)

    ref = cossim_reference(x, centroids)
    assert logits.shape == (batch, nclass)
    assert jnp.allclose(logits, ref, atol=1e-5, rtol=1e-5), "mismatch vs reference"

    print("KERNEL_OK")
</pallas_src>

<mosaic_0001>
module attributes {stable_mosaic.version = 11 : i64} {
  func.func @_cossim_kernel(%arg0: i32, %arg1: i32, %arg2: memref<8x32xf32, #tpu.memory_space<vmem>>, %arg3: memref<32x128xf32, #tpu.memory_space<vmem>>, %arg4: memref<8x128xf32, #tpu.memory_space<vmem>>, %arg5: memref<8x1xf32, #tpu.memory_space<vmem>>) attributes {dimension_semantics = [#tpu.dimension_semantics<parallel>, #tpu.dimension_semantics<arbitrary>], iteration_bounds = array<i64: 1, 1>, scalar_prefetch = 0 : i64, scratch_operands = 1 : i64, tpu.core_type = #tpu.core_type<tc>, window_params = [{transform_indices = @transform_0, window_bounds = array<i64: 8, 32>}, {transform_indices = @transform_1, window_bounds = array<i64: 32, 128>}, {transform_indices = @transform_2, window_bounds = array<i64: 8, 128>}]} {
    %c0_i32 = arith.constant 0 : i32
    %0 = arith.cmpi eq, %arg1, %c0_i32 : i32
    %1 = arith.extui %0 : i1 to i32
    %c0_i32_0 = arith.constant 0 : i32
    %2 = arith.cmpi ne, %1, %c0_i32_0 : i32
    scf.if %2 {
      %c0_8 = arith.constant 0 : index
      %c0_9 = arith.constant 0 : index
      %10 = vector.load %arg2[%c0_8, %c0_9] : memref<8x32xf32, #tpu.memory_space<vmem>>, vector<8x32xf32>
      %11 = arith.mulf %10, %10 : vector<8x32xf32>
      %cst_10 = arith.constant dense<0.000000e+00> : vector<8xf32>
      %12 = vector.multi_reduction <add>, %11, %cst_10 [1] : vector<8x32xf32> to vector<8xf32>
      %13 = vector.shape_cast %12 : vector<8xf32> to vector<8x1xf32>
      %14 = math.rsqrt %13 : vector<8x1xf32>
      %c0_11 = arith.constant 0 : index
      %c0_12 = arith.constant 0 : index
      %15 = vector.load %arg5[%c0_11, %c0_12] : memref<8x1xf32, #tpu.memory_space<vmem>>, vector<8x1xf32>
      tpu.vector_store %arg5[%c0_11, %c0_12], %14 {strides = array<i32>} : memref<8x1xf32, #tpu.memory_space<vmem>>, vector<8x1xf32>,
    } else {
    }
    %c0 = arith.constant 0 : index
    %c0_1 = arith.constant 0 : index
    %3 = vector.load %arg2[%c0, %c0_1] : memref<8x32xf32, #tpu.memory_space<vmem>>, vector<8x32xf32>
    %c0_2 = arith.constant 0 : index
    %c0_3 = arith.constant 0 : index
    %4 = vector.load %arg3[%c0_2, %c0_3] : memref<32x128xf32, #tpu.memory_space<vmem>>, vector<32x128xf32>
    %cst = arith.constant dense<0.000000e+00> : vector<8x128xf32>
    %5 = tpu.matmul %3, %4, %cst {dimension_numbers = #tpu.dot_dimension_numbers<[1], [0], [0], [1], [0, 0, 1, 1], [], []>} : vector<8x32xf32>, vector<32x128xf32>, vector<8x128xf32> -> vector<8x128xf32>
    %c0_4 = arith.constant 0 : index
    %c0_5 = arith.constant 0 : index
    %6 = vector.load %arg5[%c0_4, %c0_5] : memref<8x1xf32, #tpu.memory_space<vmem>>, vector<8x1xf32>
    %7 = vector.broadcast %6 : vector<8x1xf32> to vector<8x128xf32>
    %8 = arith.mulf %5, %7 : vector<8x128xf32>
    %c0_6 = arith.constant 0 : index
    %c0_7 = arith.constant 0 : index
    %9 = vector.load %arg4[%c0_6, %c0_7] : memref<8x128xf32, #tpu.memory_space<vmem>>, vector<8x128xf32>
    tpu.vector_store %arg4[%c0_6, %c0_7], %8 {strides = array<i32>} : memref<8x128xf32, #tpu.memory_space<vmem>>, vector<8x128xf32>,
    return
  }
  func.func @transform_0(%arg0: i32, %arg1: i32) -> (i32, i32) {
    %c0_i32 = arith.constant 0 : i32
    %c0_i32_0 = arith.constant 0 : i32
    return %arg0, %c0_i32 : i32, i32
  }
  func.func @transform_1(%arg0: i32, %arg1: i32) -> (i32, i32) {
    %c0_i32 = arith.constant 0 : i32
    %c0_i32_0 = arith.constant 0 : i32
    return %c0_i32, %arg1 : i32, i32
  }
  func.func @transform_2(%arg0: i32, %arg1: i32) -> (i32, i32) {
    %c0_i32 = arith.constant 0 : i32
    return %arg0, %arg1 : i32, i32
  }
}

</mosaic_0001>

<llo_original>
// kernel: tpu_custom_call.1
$region0: #{tpu_custom_call.1}
  #allocation0 [shape = 'u32[]', space=smem, size = 0x4, offset = 0x4, fixed_abs, tag = 'smem constant byte address 0x4 - core index']
  #allocation1 [shape = 'u32[72,128]{1,0:T(1,128)}', space=vmem, size = 0x9000, scoped, tag = 'internal scratch']
  #allocation2 [shape = 'f32[8,1]{1,0:T(8,128)}', space=vmem, size = 0x1000, scoped, tag = 'scratch operand']
  %s0 = inlined_call_operand.hbm [shape: f32[8,32], index: 0, kind: input, shape index: {}]
  %s1 = inlined_call_operand.hbm [shape: f32[32,128], index: 1, kind: input, shape index: {}]
  %s2 = inlined_call_operand.hbm [shape: f32[8,128], index: 2, kind: output, shape index: {}]
  %s3 = sld [smem:[#allocation0]]
  $region30: #{tpu_custom_call.1} parent=0
    _
  %s5 = ssub.s32 1, %s3
  %s6 = scalar_select 0, %s5, %s3
  $region1: #{tpu_custom_call.1} parent=0
    #allocation3 [shape = 'u8[4096]{0}', space=vmem, size = 0x1000, scoped, tag = 'input window, operand 0, single buffered']
    #allocation4 [shape = 's32[1]{0}', space=sflag, size = 0x4, scoped, tag = 'scoped memory for tpu_custom_call.1']
    #allocation5 [shape = 's32[1]{0}', space=sflag, size = 0x4, scoped, tag = 'scoped memory for tpu_custom_call.1']
    #allocation6 [shape = 'u8[16384]{0}', space=vmem, size = 0x4000, scoped, tag = 'input window, operand 1, single buffered']
    #allocation7 [shape = 's32[1]{0}', space=sflag, size = 0x4, scoped, tag = 'scoped memory for tpu_custom_call.1']
    #allocation8 [shape = 'u8[4096]{0}', space=vmem, size = 0x1000, scoped, tag = 'output window, operand 0, single buffered']
    %7 = vsyncpa [#allocation4], 0
    %8 = vsyncpa [#allocation7], 0
    %9 = vsyncpa [#allocation5], 0
    // Predicated region
    $region2: #{tpu_custom_call.1} parent=1 // pred_check
      _
    $region3: #{tpu_custom_call.1} parent=1 // pred_check_branch
      %11 = sbr.rel (0) target = $region5
    $region4: #{tpu_custom_call.1} parent=1 // pred_region
      %13 = vsyncadd [#allocation4], 0
      %s15 = sshll.u32 %s0, 4
      %s16 = int_to_ptr.hbm [resolvable:$true] %s15
      %s17 = sshll.u32 [#allocation3], 4
      %s18 = int_to_ptr.vmem [resolvable:$true] %s17
      %20 = dma.hbm_to_vmem [thread:$0]  %s16, 128, %s18, [#allocation4]
    $region5: #{tpu_custom_call.1} parent=1 // pred_fallthru
      _
    // Predicated region
    $region6: #{tpu_custom_call.1} parent=1 // pred_check
      _
    $region7: #{tpu_custom_call.1} parent=1 // pred_check_branch
      %22 = sbr.rel (0) target = $region9
    $region8: #{tpu_custom_call.1} parent=1 // pred_region
      %24 = vsyncadd [#allocation7], 0
      %s25 = sshll.u32 %s1, 4
      %s26 = int_to_ptr.hbm [resolvable:$true] %s25
      %s27 = sshll.u32 [#allocation6], 4
      %s28 = int_to_ptr.vmem [resolvable:$true] %s27
      %33 = dma.hbm_to_vmem [thread:$0]  %s26, 512, %s28, [#allocation7], 128, 128, 8
    $region9: #{tpu_custom_call.1} parent=1 // pred_fallthru
      _
    // Predicated region
    $region10: #{tpu_custom_call.1} parent=1 // pred_check
      _
    $region11: #{tpu_custom_call.1} parent=1 // pred_check_branch
      %35 = sbr.rel (0) target = $region13
    $region12: #{tpu_custom_call.1} parent=1 // pred_region
      %37 = dma.done [#allocation4], 128
    $region13: #{tpu_custom_call.1} parent=1 // pred_fallthru
      _
    // Predicated region
    $region14: #{tpu_custom_call.1} parent=1 // pred_check
      _
    $region15: #{tpu_custom_call.1} parent=1 // pred_check_branch
      %39 = sbr.rel (0) target = $region17
    $region16: #{tpu_custom_call.1} parent=1 // pred_region
      %41 = dma.done [#allocation7], 512
    $region17: #{tpu_custom_call.1} parent=1 // pred_fallthru
      _
    %p42 = scmp.eq.s32.totalorder 0, 0
    // Predicated region
    $region18: #{tpu_custom_call.1} parent=1 // pred_check
      %p43 = pneg %p42
    $region19: #{tpu_custom_call.1} parent=1 // pred_check_branch
      %45 = sbr.rel (%p43) target = $region21
    $region20: #{tpu_custom_call.1} parent=1 // pred_region
      %v46 = vld [vmem:[#allocation3] sm:$0xff]
      %v47 = vmul.f32 %v46, %v46
      %vm48 = vcmask 261120
      %v49 = vsel %vm48, %v47, 0.0
      %50 = vadd.xlane.f32.xlu0 %v49
      %v51 = vpop.xlane.xlu0 %50
      %v52 = vrsqrt.pop %v51
      %v53 = vmul.f32 %v52, %v51
      %v54 = vmul.f32 %v53, %v52
      %v55 = vmul.f32 0.5, %v54
      %v56 = vsub.f32 1.5, %v55
      %v57 = vmul.f32 %v52, %v56
      %vm58 = vweird.f32 %v51
      %vm59 = vweird.f32 %v52
      %vm60 = vmor %vm58, %vm59
      %v61 = vsel %vm60, %v52, %v57
      %vm62 = vcmask 7168
      %63 = vst.msk [vmem:[#allocation2] sm:$0xff] %vm62, %v61
    $region21: #{tpu_custom_call.1} parent=1 // pred_fallthru
      _
    %v64 = vld [vmem:[#allocation3] sm:$0xff]
    %v65 = vld [vmem:[#allocation6] sm:$0xff]
    %v66 = vld [vmem:[#allocation6 + $0x8] sm:$0xff]
    %v67 = vld [vmem:[#allocation6 + $0x10] sm:$0xff]
    %v68 = vld [vmem:[#allocation6 + $0x18] sm:$0xff]
    %vm69 = vcmask 261120
    %v71 = vsel %vm69, %v64, 0
    %73 = vmatpush.msra.mxu0 0.0
    %74 = vmatpush.msra.mxu0 0.0
    %75 = vmatpush.msra.mxu0 0.0
    %76 = vmatpush.msra.mxu0 0.0
    %77 = vmatpush.msra.mxu0 0.0
    %78 = vmatpush.msra.mxu0 0.0
    %79 = vmatpush.msra.mxu0 0.0
    %80 = vmatpush.msra.mxu0 0.0
    %81 = vmatpush.msra.mxu0 0.0
    %82 = vmatpush.msra.mxu0 0.0
    %83 = vmatpush.msra.mxu0 0.0
    %84 = vmatpush.msra.mxu0 0.0
    %85 = vmatpush.msra.mxu0 %v68
    %86 = vmatpush.msra.mxu0 %v67
    %87 = vmatpush.msra.mxu0 %v66
    %88 = vmatpush.msra.mxu0 %v65
    %89 = vmatmul.f32.gmra.mxu0 %v71
    %v90 = vpop.f32.mrf.mxu0
    %v91 = vadd.f32 0.0, %v90
    %92 = vdwg.mxu0
    %v93 = vld [vmem:[#allocation2] sm:$0xff]
    %95 = vset.pattern.permute.xlu0 0
    %96 = vperm.xlu0 %95, %v93
    %v97 = vpop.permute.xlu0 %96
    %v99 = vmul.f32 %v91, %v97
    %100 = vst [vmem:[#allocation8] sm:$0xff] %v99
    // Predicated region
    $region22: #{tpu_custom_call.1} parent=1 // pred_check
      _
    $region23: #{tpu_custom_call.1} parent=1 // pred_check_branch
      %102 = sbr.rel (0) target = $region25
    $region24: #{tpu_custom_call.1} parent=1 // pred_region
      %104 = vsyncadd [#allocation5], 0
      %s106 = sshll.u32 [#allocation8], 4
      %s107 = int_to_ptr.vmem [resolvable:$true] %s106
      %s108 = sshll.u32 %s2, 4
      %s109 = int_to_ptr.hbm [resolvable:$true] %s108
      %111 = dma.vmem_to_hbm [thread:$0]  %s107, 128, %s109, [#allocation5]
    $region25: #{tpu_custom_call.1} parent=1 // pred_fallthru
      _
    // Predicated region
    $region26: #{tpu_custom_call.1} parent=1 // pred_check
      _
    $region27: #{tpu_custom_call.1} parent=1 // pred_check_branch
      %113 = sbr.rel (0) target = $region29
    $region28: #{tpu_custom_call.1} parent=1 // pred_region
      %115 = dma.done [#allocation5], 128
    $region29: #{tpu_custom_call.1} parent=1 // pred_fallthru
      _
    %116 = vsyncpa [#allocation4], 1
    %117 = vsyncpa [#allocation7], 1
    %118 = vsyncpa [#allocation5], 1

</llo_original>
